<compile_context>
chip_gen: v6e
topology: v6e:2x2x1
jax: 0.10.0
libtpu: 0.0.40
codegen_flags: <defaults>
</compile_context>

<pallas_src>
import jax
import jax.numpy as jnp
from jax import lax
from jax.experimental import pallas as pl
from jax.experimental.pallas import tpu as pltpu


def _bilstm_step(x, h_prev, c_prev, w, b):
    """One bidirectional LSTM step (both directions at once).

    x: (1, H) f32, h_prev/c_prev: (2, H) f32, w: (2H, 8H) f32, b: (2, 4H) f32.
    Returns (h_new, c_new), each (2, H) f32.
    """
    H = h_prev.shape[-1]
    # LHS row d = [x | h_d]  -> single MXU matmul with K = 2H.
    lhs = jnp.concatenate([jnp.broadcast_to(x, (2, H)), h_prev], axis=1)        # (2, 2H)
    res = jnp.dot(lhs, w, preferred_element_type=jnp.float32)                    # (2, 8H)
    # Block-diagonal pick via static sublane slices (no iota / select on the critical path):
    # row 0 uses cols [0:4H] (fwd), row 1 uses cols [4H:8H] (bwd).
    gates = jnp.concatenate([res[0:1, :4 * H], res[1:2, 4 * H:]], axis=0) + b    # (2, 4H)

    i = jax.nn.sigmoid(gates[:, 0 * H:1 * H])
    f = jax.nn.sigmoid(gates[:, 1 * H:2 * H])
    g = jnp.tanh(gates[:, 2 * H:3 * H])
    o = jax.nn.sigmoid(gates[:, 3 * H:4 * H])

    c_new = f * c_prev + i * g
    h_new = o * jnp.tanh(c_new)
    return h_new, c_new


# ------------------------- single-step kernel (one forward() call) -------------------------

def encoder_lstm_kernel(x_ref, attn_ref, h0_ref, c0_ref, w_ref, b_ref, hn_ref, cn_ref):
    x = x_ref[...] * attn_ref[...]                   # embedded = input.view(1,1,-1) * attention
    w = w_ref[...].astype(jnp.float32)               # bf16 in memory, f32 on the MXU
    h_new, c_new = _bilstm_step(x, h0_ref[...], c0_ref[...], w, b_ref[...])
    hn_ref[...] = h_new.astype(hn_ref.dtype)
    cn_ref[...] = c_new.astype(cn_ref.dtype)


def encoder_rnn_forward(input_tensor, hidden, attention, params):
    """Mirror of EncoderRNN.forward (single timestep).

    Returns (output (1,1,2H), (h_n (2,1,H), c_n (2,1,H))).
    """
    h0, c0 = hidden
    H = h0.shape[-1]
    x = input_tensor.reshape(1, H).astype(jnp.float32)
    attn = jnp.broadcast_to(jnp.asarray(attention, jnp.float32), (1, 1, H)).reshape(1, H)
    h0f = h0.reshape(2, H).astype(jnp.float32)
    c0f = c0.reshape(2, H).astype(jnp.float32)

    w_bytes = (2 * H) * (8 * H) * 2
    io_bytes = (2 * (4 * H) + 2 * H + 4 * (2 * H)) * 4
    cost = pl.CostEstimate(flops=2 * 2 * (2 * H) * (8 * H),
                           transcendentals=10 * H,
                           bytes_accessed=w_bytes + io_bytes)
    # bf16 weight block + its f32 upcast + headroom.
    vmem_needed = 3 * w_bytes + (2 << 20)
    cparams = pltpu.CompilerParams(
        vmem_limit_bytes=int(min(96 * 2**20, max(24 * 2**20, vmem_needed))))

    vmem = pl.BlockSpec(memory_space=pltpu.MemorySpace.VMEM)
    h_n, c_n = pl.pallas_call(
        encoder_lstm_kernel,
        out_shape=(jax.ShapeDtypeStruct((2, H), jnp.float32),
                   jax.ShapeDtypeStruct((2, H), jnp.float32)),
        in_specs=[vmem] * 6,
        out_specs=(vmem, vmem),
        compiler_params=cparams,
        cost_estimate=cost,
    )(x, attn, h0f, c0f, params['w_all'], params['bias'])

    # PyTorch bidirectional output for seq_len=1 is [h_fwd | h_bwd] -> pure layout plumbing.
    output = h_n.reshape(1, 1, 2 * H)
    return output, (h_n.reshape(2, 1, H), c_n.reshape(2, 1, H))


# ---------------- multi-step variant: weights resident across a timestep grid ----------------

def encoder_lstm_seq_kernel(x_ref, attn_ref, h0_ref, c0_ref, w_ref, b_ref,
                            out_ref, hn_ref, cn_ref, h_sc, c_sc):
    @pl.when(pl.program_id(0) == 0)
    def _():
        h_sc[...] = h0_ref[...]
        c_sc[...] = c0_ref[...]

    # Hoisted once per grid step, amortized over the U timesteps below.
    w = w_ref[...].astype(jnp.float32)
    b = b_ref[...]
    U = x_ref.shape[0]

    def body(u, carry):
        h, c = carry
        x = x_ref[u] * attn_ref[u]                          # (1, H)
        h, c = _bilstm_step(x, h, c, w, b)
        out_ref[u] = h.astype(out_ref.dtype)                # per-step output (2, H)
        return h, c

    h, c = lax.fori_loop(0, U, body, (h_sc[...], c_sc[...]), unroll=True)
    h_sc[...] = h
    c_sc[...] = c

    # Only the last grid step's state matters for the final (h_n, c_n) outputs.
    @pl.when(pl.program_id(0) == pl.num_programs(0) - 1)
    def _():
        hn_ref[...] = h.astype(hn_ref.dtype)
        cn_ref[...] = c.astype(cn_ref.dtype)


def encoder_rnn_forward_seq(inputs, hidden, attentions, params, steps_per_block=4):
    """T successive EncoderRNN.forward steps in ONE pallas_call (decode-loop calling pattern).

    inputs/attentions: (T, 1, 1, H); hidden: (h0, c0) each (2, 1, H).
    Returns (outputs (T, 1, 1, 2H), (h_T (2,1,H), c_T (2,1,H))).
    Weights stay resident in VMEM across the whole grid; h/c carried in VMEM scratch;
    each grid step processes U timesteps to amortize per-step pipeline overhead.
    """
    h0, c0 = hidden
    H = h0.shape[-1]
    T = inputs.shape[0]
    # Largest U <= steps_per_block dividing T.
    U = max(d for d in range(1, min(steps_per_block, T) + 1) if T % d == 0)

    x = inputs.reshape(T, 1, H).astype(jnp.float32)
    attn = jnp.broadcast_to(jnp.asarray(attentions, jnp.float32),
                            (T, 1, 1, H)).reshape(T, 1, H)
    h0f = h0.reshape(2, H).astype(jnp.float32)
    c0f = c0.reshape(2, H).astype(jnp.float32)

    resident = pl.Buffered(1)   # single copy for constant-index_map (resident) blocks
    grid_spec = pltpu.PrefetchScalarGridSpec(
        num_scalar_prefetch=0,
        grid=(T // U,),
        in_specs=[
            pl.BlockSpec((U, 1, H), lambda s: (s, 0, 0)),                          # x block
            pl.BlockSpec((U, 1, H), lambda s: (s, 0, 0)),                          # attn block
            pl.BlockSpec((2, H), lambda s: (0, 0), pipeline_mode=resident),        # h0
            pl.BlockSpec((2, H), lambda s: (0, 0), pipeline_mode=resident),        # c0
            pl.BlockSpec((2 * H, 8 * H), lambda s: (0, 0), pipeline_mode=resident),  # weights
            pl.BlockSpec((2, 4 * H), lambda s: (0, 0), pipeline_mode=resident),      # bias
        ],
        out_specs=(
            pl.BlockSpec((U, 2, H), lambda s: (s, 0, 0)),        # per-step h (lane-dense)
            pl.BlockSpec((2, H), lambda s: (0, 0)),              # final h
            pl.BlockSpec((2, H), lambda s: (0, 0)),              # final c
        ),
        scratch_shapes=[pltpu.VMEM((2, H), jnp.float32),
                        pltpu.VMEM((2, H), jnp.float32)],
    )

    w_bf16 = (2 * H) * (8 * H) * 2
    w_f32 = (2 * H) * (8 * H) * 4
    stream = 2 * 2 * (U * H * 4) * 2 + 2 * (U * 2 * H * 4)     # double-buffered x/attn + out
    vmem_needed = w_bf16 + w_f32 + stream + (4 << 20)
    cparams = pltpu.CompilerParams(
        dimension_semantics=("arbitrary",),
        vmem_limit_bytes=int(min(96 * 2**20, max(24 * 2**20, vmem_needed))))

    per_step_io = (2 * H + 2 * H) * 4
    cost = pl.CostEstimate(flops=T * 2 * 2 * (2 * H) * (8 * H),
                           transcendentals=T * 10 * H,
                           bytes_accessed=w_bf16 + 2 * (4 * H) * 4
                           + T * per_step_io + 4 * (2 * H) * 4)

    outs, h_n, c_n = pl.pallas_call(
        encoder_lstm_seq_kernel,
        out_shape=(jax.ShapeDtypeStruct((T, 2, H), jnp.float32),
                   jax.ShapeDtypeStruct((2, H), jnp.float32),
                   jax.ShapeDtypeStruct((2, H), jnp.float32)),
        grid_spec=grid_spec,
        compiler_params=cparams,
        cost_estimate=cost,
    )(x, attn, h0f, c0f, params['w_all'], params['bias'])

    outputs = outs.reshape(T, 1, 1, 2 * H)
    return outputs, (h_n.reshape(2, 1, H), c_n.reshape(2, 1, H))


# --------------------------------------- parameters ---------------------------------------

def init_params(key, H):
    """PyTorch-style uniform(-1/sqrt(H), 1/sqrt(H)) LSTM params, fused + bf16 weights."""
    k = 1.0 / jnp.sqrt(jnp.float32(H))
    keys = jax.random.split(key, 4)
    # PyTorch layout: weight_ih/hh per direction (4H, H); bias_ih/hh (4H,). Gate order [i,f,g,o].
    w_ih_pt = jax.random.uniform(keys[0], (2, 4 * H, H), jnp.float32, -k, k)
    w_hh_pt = jax.random.uniform(keys[1], (2, 4 * H, H), jnp.float32, -k, k)
    b_ih = jax.random.uniform(keys[2], (2, 4 * H), jnp.float32, -k, k)
    b_hh = jax.random.uniform(keys[3], (2, 4 * H), jnp.float32, -k, k)

    w_ih = jnp.transpose(w_ih_pt, (0, 2, 1))                 # (2, H, 4H)
    w_hh = jnp.transpose(w_hh_pt, (0, 2, 1))                 # (2, H, 4H)
    w_cat = jnp.concatenate([w_ih, w_hh], axis=1)            # (2, 2H, 4H): rows = [x | h]
    w_all = jnp.concatenate([w_cat[0], w_cat[1]], axis=1)    # (2H, 8H): cols = [dir0 | dir1]
    return {
        'w_all': w_all.astype(jnp.bfloat16),                 # bf16 storage, f32 compute
        'bias': (b_ih + b_hh).astype(jnp.float32),           # (2, 4H)
    }


# ---------------------------------------- reference ----------------------------------------

def _reference(input_tensor, hidden, attention, params):
    """Pure-JAX f32 reference of the same forward pass (weights read back from bf16)."""
    h0, c0 = hidden
    H = h0.shape[-1]
    x = input_tensor.reshape(1, H) * jnp.broadcast_to(attention, (1, 1, H)).reshape(1, H)
    w_all = params['w_all'].astype(jnp.float32)              # (2H, 8H)
    b = params['bias']
    h0f, c0f = h0.reshape(2, H), c0.reshape(2, H)
    hs, cs = [], []
    for d in range(2):
        w_cat = w_all[:, d * 4 * H:(d + 1) * 4 * H]
        gates = x @ w_cat[:H] + h0f[d:d + 1] @ w_cat[H:] + b[d:d + 1]
        i = jax.nn.sigmoid(gates[:, 0 * H:1 * H])
        f = jax.nn.sigmoid(gates[:, 1 * H:2 * H])
        g = jnp.tanh(gates[:, 2 * H:3 * H])
        o = jax.nn.sigmoid(gates[:, 3 * H:4 * H])
        c_new = f * c0f[d:d + 1] + i * g
        h_new = o * jnp.tanh(c_new)
        hs.append(h_new)
        cs.append(c_new)
    out = jnp.concatenate(hs, axis=-1).reshape(1, 1, 2 * H)
    h_n = jnp.concatenate(hs, 0).reshape(2, 1, H)
    c_n = jnp.concatenate(cs, 0).reshape(2, 1, H)
    return out, (h_n, c_n)


if __name__ == "__main__":
    H = 128      # hidden_size: kept small but lane-aligned (multiple of 128)
    T = 8        # timesteps for the weight-resident sequence variant
    key = jax.random.PRNGKey(0)
    k_param, k_in, k_h, k_c, k_attn, k_sin, k_sattn = jax.random.split(key, 7)

    params = init_params(k_param, H)

    input_tensor = jax.random.normal(k_in, (1, 1, H), jnp.float32)
    h0 = jax.random.normal(k_h, (2, 1, H), jnp.float32)
    c0 = jax.random.normal(k_c, (2, 1, H), jnp.float32)
    attention = jax.random.normal(k_attn, (1, 1, H), jnp.float32)

    # --- single-step (exact forward() semantics) ---
    out, (h_n, c_n) = encoder_rnn_forward(input_tensor, (h0, c0), attention, params)
    jax.block_until_ready((out, h_n, c_n))

    ref_out, (ref_h, ref_c) = _reference(input_tensor, (h0, c0), attention, params)
    assert out.shape == (1, 1, 2 * H)
    assert h_n.shape == (2, 1, H) and c_n.shape == (2, 1, H)
    assert jnp.allclose(out, ref_out, atol=2e-2)
    assert jnp.allclose(h_n, ref_h, atol=2e-2)
    assert jnp.allclose(c_n, ref_c, atol=2e-2)

    # --- T chained forward() calls fused into one pallas_call (weights resident in VMEM) ---
    seq_in = jax.random.normal(k_sin, (T, 1, 1, H), jnp.float32)
    seq_attn = jax.random.normal(k_sattn, (T, 1, 1, H), jnp.float32)
    outs, (h_T, c_T) = encoder_rnn_forward_seq(seq_in, (h0, c0), seq_attn, params,
                                               steps_per_block=4)
    jax.block_until_ready((outs, h_T, c_T))

    rh, rc = h0, c0
    ref_outs = []
    for t in range(T):
        ro, (rh, rc) = _reference(seq_in[t], (rh, rc), seq_attn[t], params)
        ref_outs.append(ro)
    ref_outs = jnp.concatenate(ref_outs, axis=0).reshape(T, 1, 1, 2 * H)
    assert outs.shape == (T, 1, 1, 2 * H)
    assert jnp.allclose(outs, ref_outs, atol=5e-2)
    assert jnp.allclose(h_T, rh, atol=5e-2)
    assert jnp.allclose(c_T, rc, atol=5e-2)

    print("KERNEL_OK")
</pallas_src>

<mosaic_0001>
module attributes {stable_mosaic.version = 11 : i64} {
  func.func @encoder_lstm_kernel(%arg0: memref<1x128xf32, #tpu.memory_space<vmem>>, %arg1: memref<1x128xf32, #tpu.memory_space<vmem>>, %arg2: memref<2x128xf32, #tpu.memory_space<vmem>>, %arg3: memref<2x128xf32, #tpu.memory_space<vmem>>, %arg4: memref<256x1024xbf16, #tpu.memory_space<vmem>>, %arg5: memref<2x512xf32, #tpu.memory_space<vmem>>, %arg6: memref<2x128xf32, #tpu.memory_space<vmem>>, %arg7: memref<2x128xf32, #tpu.memory_space<vmem>>) attributes {dimension_semantics = [], scalar_prefetch = 0 : i64, scratch_operands = 0 : i64, tpu.core_type = #tpu.core_type<tc>} {
    %c0 = arith.constant 0 : index
    %c0_0 = arith.constant 0 : index
    %0 = vector.load %arg0[%c0, %c0_0] : memref<1x128xf32, #tpu.memory_space<vmem>>, vector<1x128xf32>
    %c0_1 = arith.constant 0 : index
    %c0_2 = arith.constant 0 : index
    %1 = vector.load %arg1[%c0_1, %c0_2] : memref<1x128xf32, #tpu.memory_space<vmem>>, vector<1x128xf32>
    %2 = arith.mulf %0, %1 : vector<1x128xf32>
    %c0_3 = arith.constant 0 : index
    %c0_4 = arith.constant 0 : index
    %3 = vector.load %arg4[%c0_3, %c0_4] : memref<256x1024xbf16, #tpu.memory_space<vmem>>, vector<256x1024xbf16>
    %4 = arith.extf %3 : vector<256x1024xbf16> to vector<256x1024xf32>
    %c0_5 = arith.constant 0 : index
    %c0_6 = arith.constant 0 : index
    %5 = vector.load %arg2[%c0_5, %c0_6] : memref<2x128xf32, #tpu.memory_space<vmem>>, vector<2x128xf32>
    %c0_7 = arith.constant 0 : index
    %c0_8 = arith.constant 0 : index
    %6 = vector.load %arg3[%c0_7, %c0_8] : memref<2x128xf32, #tpu.memory_space<vmem>>, vector<2x128xf32>
    %c0_9 = arith.constant 0 : index
    %c0_10 = arith.constant 0 : index
    %7 = vector.load %arg5[%c0_9, %c0_10] : memref<2x512xf32, #tpu.memory_space<vmem>>, vector<2x512xf32>
    %8 = vector.shape_cast %2 : vector<1x128xf32> to vector<1x128xf32>
    %9 = vector.broadcast %8 : vector<1x128xf32> to vector<2x128xf32>
    %10 = tpu.concatenate %9, %5 in 1 : vector<2x128xf32>, vector<2x128xf32> -> vector<2x256xf32>
    %cst = arith.constant dense<0.000000e+00> : vector<2x1024xf32>
    %11 = tpu.matmul %10, %4, %cst {dimension_numbers = #tpu.dot_dimension_numbers<[1], [0], [0], [1], [0, 0, 1, 1], [], []>} : vector<2x256xf32>, vector<256x1024xf32>, vector<2x1024xf32> -> vector<2x1024xf32>
    %12 = vector.extract_strided_slice %11 {offsets = [0, 0], sizes = [1, 512], strides = [1, 1]} : vector<2x1024xf32> to vector<1x512xf32>
    %13 = vector.extract_strided_slice %11 {offsets = [1, 512], sizes = [1, 512], strides = [1, 1]} : vector<2x1024xf32> to vector<1x512xf32>
    %14 = tpu.concatenate %12, %13 in 0 : vector<1x512xf32>, vector<1x512xf32> -> vector<2x512xf32>
    %15 = arith.addf %14, %7 : vector<2x512xf32>
    %16 = vector.extract_strided_slice %15 {offsets = [0, 0], sizes = [2, 128], strides = [1, 1]} : vector<2x512xf32> to vector<2x128xf32>
    %17 = arith.negf %16 : vector<2x128xf32>
    %18 = math.exp %17 : vector<2x128xf32>
    %cst_11 = arith.constant 1.000000e+00 : f32
    %19 = vector.broadcast %cst_11 : f32 to vector<2x128xf32>
    %20 = arith.addf %19, %18 : vector<2x128xf32>
    %21 = arith.divf %19, %20 : vector<2x128xf32>
    %22 = vector.extract_strided_slice %15 {offsets = [0, 128], sizes = [2, 128], strides = [1, 1]} : vector<2x512xf32> to vector<2x128xf32>
    %23 = arith.negf %22 : vector<2x128xf32>
    %24 = math.exp %23 : vector<2x128xf32>
    %cst_12 = arith.constant 1.000000e+00 : f32
    %25 = vector.broadcast %cst_12 : f32 to vector<2x128xf32>
    %26 = arith.addf %25, %24 : vector<2x128xf32>
    %27 = arith.divf %25, %26 : vector<2x128xf32>
    %28 = vector.extract_strided_slice %15 {offsets = [0, 256], sizes = [2, 128], strides = [1, 1]} : vector<2x512xf32> to vector<2x128xf32>
    %29 = math.tanh %28 : vector<2x128xf32>
    %30 = vector.extract_strided_slice %15 {offsets = [0, 384], sizes = [2, 128], strides = [1, 1]} : vector<2x512xf32> to vector<2x128xf32>
    %31 = arith.negf %30 : vector<2x128xf32>
    %32 = math.exp %31 : vector<2x128xf32>
    %cst_13 = arith.constant 1.000000e+00 : f32
    %33 = vector.broadcast %cst_13 : f32 to vector<2x128xf32>
    %34 = arith.addf %33, %32 : vector<2x128xf32>
    %35 = arith.divf %33, %34 : vector<2x128xf32>
    %36 = arith.mulf %27, %6 : vector<2x128xf32>
    %37 = arith.mulf %21, %29 : vector<2x128xf32>
    %38 = arith.addf %36, %37 : vector<2x128xf32>
    %39 = math.tanh %38 : vector<2x128xf32>
    %40 = arith.mulf %35, %39 : vector<2x128xf32>
    %c0_14 = arith.constant 0 : index
    %c0_15 = arith.constant 0 : index
    %41 = vector.load %arg6[%c0_14, %c0_15] : memref<2x128xf32, #tpu.memory_space<vmem>>, vector<2x128xf32>
    tpu.vector_store %arg6[%c0_14, %c0_15], %40 {strides = array<i32>} : memref<2x128xf32, #tpu.memory_space<vmem>>, vector<2x128xf32>,
    %c0_16 = arith.constant 0 : index
    %c0_17 = arith.constant 0 : index
    %42 = vector.load %arg7[%c0_16, %c0_17] : memref<2x128xf32, #tpu.memory_space<vmem>>, vector<2x128xf32>
    tpu.vector_store %arg7[%c0_16, %c0_17], %38 {strides = array<i32>} : memref<2x128xf32, #tpu.memory_space<vmem>>, vector<2x128xf32>,
    return
  }
}

</mosaic_0001>

<llo_original>
// kernel: tpu_custom_call.1
$region0: #{tpu_custom_call.1}
  #allocation0 [shape = 'u32[]', space=smem, size = 0x4, offset = 0x4, fixed_abs, tag = 'smem constant byte address 0x4 - core index']
  #allocation1 [shape = 'u32[144,128]{1,0:T(1,128)}', space=vmem, size = 0x12000, scoped, tag = 'internal scratch']
  %s0 = inlined_call_operand.hbm [shape: f32[1,128], index: 0, kind: input, shape index: {}]
  %s1 = inlined_call_operand.vmem [shape: f32[1,128], index: 1, kind: input, shape index: {}]
  %s2 = inlined_call_operand.hbm [shape: f32[2,128], index: 2, kind: input, shape index: {}]
  %s3 = inlined_call_operand.hbm [shape: f32[2,128], index: 3, kind: input, shape index: {}]
  %s4 = inlined_call_operand.hbm [shape: bf16[256,1024], index: 4, kind: input, shape index: {}]
  %s5 = inlined_call_operand.vmem [shape: f32[2,512], index: 5, kind: input, shape index: {}]
  %s6 = inlined_call_operand.hbm [shape: f32[2,128], index: 6, kind: output, shape index: {0}]
  %s7 = inlined_call_operand.hbm [shape: f32[2,128], index: 7, kind: output, shape index: {1}]
  %8 = xla_tuple %s6, %s7
  %s9 = sld [smem:[#allocation0]]
  $region58: #{tpu_custom_call.1} parent=0
    _
  %s11 = ssub.s32 1, %s9
  %s12 = scalar_select 0, %s11, %s9
  $region1: #{tpu_custom_call.1} parent=0
    #allocation2 [shape = 'u8[512]{0}', space=vmem, size = 0x400, scoped, tag = 'input window, operand 0, single buffered']
    #allocation3 [shape = 's32[1]{0}', space=sflag, size = 0x4, scoped, tag = 'scoped memory for tpu_custom_call.1']
    #allocation4 [shape = 's32[1]{0}', space=sflag, size = 0x4, scoped, tag = 'scoped memory for tpu_custom_call.1']
    #allocation5 [shape = 'u8[1024]{0}', space=vmem, size = 0x400, scoped, tag = 'input window, operand 2, single buffered']
    #allocation6 [shape = 's32[1]{0}', space=sflag, size = 0x4, scoped, tag = 'scoped memory for tpu_custom_call.1']
    #allocation7 [shape = 'u8[1024]{0}', space=vmem, size = 0x400, scoped, tag = 'input window, operand 3, single buffered']
    #allocation8 [shape = 'u8[524288]{0}', space=vmem, size = 0x80000, scoped, tag = 'input window, operand 4, single buffered']
    #allocation9 [shape = 's32[1]{0}', space=sflag, size = 0x4, scoped, tag = 'scoped memory for tpu_custom_call.1']
    #allocation10 [shape = 'u8[1024]{0}', space=vmem, size = 0x400, scoped, tag = 'output window, operand 0, single buffered']
    #allocation11 [shape = 'u8[1024]{0}', space=vmem, size = 0x400, scoped, tag = 'output window, operand 1, single buffered']
    #allocation12 [shape = 's32[1]{0}', space=sflag, size = 0x4, scoped, tag = 'scoped memory for tpu_custom_call.1']
    %13 = vsyncpa [#allocation3], 0
    %14 = vsyncpa [#allocation6], 0
    %15 = vsyncpa [#allocation9], 0
    %16 = vsyncpa [#allocation4], 0
    %17 = vsyncpa [#allocation12], 0
    // Predicated region
    $region2: #{tpu_custom_call.1} parent=1 // pred_check
      _
    $region3: #{tpu_custom_call.1} parent=1 // pred_check_branch
      %19 = sbr.rel (0) target = $region5
    $region4: #{tpu_custom_call.1} parent=1 // pred_region
      %s21 = ssub.s32 16, 16
      %22 = vsyncadd [#allocation3], %s21
      %s24 = sshll.u32 [#allocation2], 4
      %s25 = int_to_ptr.vmem [resolvable:$true] %s24
      %27 = dma.hbm_to_vmem [thread:$0]  %s0, 16, %s25, [#allocation3]
    $region5: #{tpu_custom_call.1} parent=1 // pred_fallthru
      _
    // Predicated region
    $region6: #{tpu_custom_call.1} parent=1 // pred_check
      _
    $region7: #{tpu_custom_call.1} parent=1 // pred_check_branch
      %29 = sbr.rel (0) target = $region9
    $region8: #{tpu_custom_call.1} parent=1 // pred_region
      _
    $region9: #{tpu_custom_call.1} parent=1 // pred_fallthru
      _
    // Predicated region
    $region10: #{tpu_custom_call.1} parent=1 // pred_check
      _
    $region11: #{tpu_custom_call.1} parent=1 // pred_check_branch
      %31 = sbr.rel (0) target = $region13
    $region12: #{tpu_custom_call.1} parent=1 // pred_region
      %s33 = ssub.s32 32, 32
      %34 = vsyncadd [#allocation6], %s33
      %s36 = sshll.u32 [#allocation5], 4
      %s37 = int_to_ptr.vmem [resolvable:$true] %s36
      %39 = dma.hbm_to_vmem [thread:$0]  %s2, 32, %s37, [#allocation6]
    $region13: #{tpu_custom_call.1} parent=1 // pred_fallthru
      _
    // Predicated region
    $region14: #{tpu_custom_call.1} parent=1 // pred_check
      _
    $region15: #{tpu_custom_call.1} parent=1 // pred_check_branch
      %41 = sbr.rel (0) target = $region17
    $region16: #{tpu_custom_call.1} parent=1 // pred_region
      %s43 = ssub.s32 32, 32
      %44 = vsyncadd [#allocation6], %s43
      %s46 = sshll.u32 [#allocation7], 4
      %s47 = int_to_ptr.vmem [resolvable:$true] %s46
      %49 = dma.hbm_to_vmem [thread:$0]  %s3, 32, %s47, [#allocation6]
    $region17: #{tpu_custom_call.1} parent=1 // pred_fallthru
      _
    // Predicated region
    $region18: #{tpu_custom_call.1} parent=1 // pred_check
      _
    $region19: #{tpu_custom_call.1} parent=1 // pred_check_branch
      %51 = sbr.rel (0) target = $region21
    $region20: #{tpu_custom_call.1} parent=1 // pred_region
      %s53 = ssub.s32 16384, 16384
      %54 = vsyncadd [#allocation9], %s53
      %s55 = sshll.u32 [#allocation8], 4
      %s56 = int_to_ptr.vmem [resolvable:$true] %s55
      %61 = dma.hbm_to_vmem [thread:$0]  %s4, 16384, %s56, [#allocation9], 512, 512, 32
    $region21: #{tpu_custom_call.1} parent=1 // pred_fallthru
      _
    // Predicated region
    $region22: #{tpu_custom_call.1} parent=1 // pred_check
      _
    $region23: #{tpu_custom_call.1} parent=1 // pred_check_branch
      %63 = sbr.rel (0) target = $region25
    $region24: #{tpu_custom_call.1} parent=1 // pred_region
      _
    $region25: #{tpu_custom_call.1} parent=1 // pred_fallthru
      _
    // Predicated region
    $region26: #{tpu_custom_call.1} parent=1 // pred_check
      _
    $region27: #{tpu_custom_call.1} parent=1 // pred_check_branch
      %65 = sbr.rel (0) target = $region29
    $region28: #{tpu_custom_call.1} parent=1 // pred_region
      %66 = dma.done [#allocation3], 16
    $region29: #{tpu_custom_call.1} parent=1 // pred_fallthru
      _
    // Predicated region
    $region30: #{tpu_custom_call.1} parent=1 // pred_check
      _
    $region31: #{tpu_custom_call.1} parent=1 // pred_check_branch
      %68 = sbr.rel (0) target = $region33
    $region32: #{tpu_custom_call.1} parent=1 // pred_region
      %69 = dma.done [#allocation6], 32
    $region33: #{tpu_custom_call.1} parent=1 // pred_fallthru
      _
    // Predicated region
    $region34: #{tpu_custom_call.1} parent=1 // pred_check
      _
    $region35: #{tpu_custom_call.1} parent=1 // pred_check_branch
      %71 = sbr.rel (0) target = $region37
    $region36: #{tpu_custom_call.1} parent=1 // pred_region
      %72 = dma.done [#allocation6], 32
    $region37: #{tpu_custom_call.1} parent=1 // pred_fallthru
      _
    // Predicated region
    $region38: #{tpu_custom_call.1} parent=1 // pred_check
      _
    $region39: #{tpu_custom_call.1} parent=1 // pred_check_branch
      %74 = sbr.rel (0) target = $region41
    $region40: #{tpu_custom_call.1} parent=1 // pred_region
      %75 = dma.done [#allocation9], 16384
    $region41: #{tpu_custom_call.1} parent=1 // pred_fallthru
      _
    %v76 = vld [vmem:[#allocation2] sm:$0x1]
    %v77 = vld [vmem:[%s1] sm:$0x1]
    %v78 = vmul.f32 %v76, %v77
    %v79 = vld [vmem:[#allocation8] sm:$0xff]
    %v80 = vld [vmem:[#allocation8 + $0x8] sm:$0xff]
    %v81 = vld [vmem:[#allocation8 + $0x10] sm:$0xff]
    %v82 = vld [vmem:[#allocation8 + $0x18] sm:$0xff]
    %v83 = vld [vmem:[#allocation8 + $0x20] sm:$0xff]
    %v84 = vld [vmem:[#allocation8 + $0x28] sm:$0xff]
    %v85 = vld [vmem:[#allocation8 + $0x30] sm:$0xff]
    %v86 = vld [vmem:[#allocation8 + $0x38] sm:$0xff]
    %v87 = vld [vmem:[#allocation8 + $0x40] sm:$0xff]
    %v88 = vld [vmem:[#allocation8 + $0x48] sm:$0xff]
    %v89 = vld [vmem:[#allocation8 + $0x50] sm:$0xff]
    %v90 = vld [vmem:[#allocation8 + $0x58] sm:$0xff]
    %v91 = vld [vmem:[#allocation8 + $0x60] sm:$0xff]
    %v92 = vld [vmem:[#allocation8 + $0x68] sm:$0xff]
    %v93 = vld [vmem:[#allocation8 + $0x70] sm:$0xff]
    %v94 = vld [vmem:[#allocation8 + $0x78] sm:$0xff]
    %v95 = vld [vmem:[#allocation8 + $0x80] sm:$0xff]
    %v96 = vld [vmem:[#allocation8 + $0x88] sm:$0xff]
    %v97 = vld [vmem:[#allocation8 + $0x90] sm:$0xff]
    %v98 = vld [vmem:[#allocation8 + $0x98] sm:$0xff]
    %v99 = vld [vmem:[#allocation8 + $0xa0] sm:$0xff]
    %v100 = vld [vmem:[#allocation8 + $0xa8] sm:$0xff]
    %v101 = vld [vmem:[#allocation8 + $0xb0] sm:$0xff]
    %v102 = vld [vmem:[#allocation8 + $0xb8] sm:$0xff]
    %v103 = vld [vmem:[#allocation8 + $0xc0] sm:$0xff]
    %v104 = vld [vmem:[#allocation8 + $0xc8] sm:$0xff]
    %v105 = vld [vmem:[#allocation8 + $0xd0] sm:$0xff]
    %v106 = vld [vmem:[#allocation8 + $0xd8] sm:$0xff]
    %v107 = vld [vmem:[#allocation8 + $0xe0] sm:$0xff]
    %v108 = vld [vmem:[#allocation8 + $0xe8] sm:$0xff]
    %v109 = vld [vmem:[#allocation8 + $0xf0] sm:$0xff]
    %v110 = vld [vmem:[#allocation8 + $0xf8] sm:$0xff]
    %v111 = vld [vmem:[#allocation8 + $0x100] sm:$0xff]
    %v112 = vld [vmem:[#allocation8 + $0x108] sm:$0xff]
    %v113 = vld [vmem:[#allocation8 + $0x110] sm:$0xff]
    %v114 = vld [vmem:[#allocation8 + $0x118] sm:$0xff]
    %v115 = vld [vmem:[#allocation8 + $0x120] sm:$0xff]
    %v116 = vld [vmem:[#allocation8 + $0x128] sm:$0xff]
    %v117 = vld [vmem:[#allocation8 + $0x130] sm:$0xff]
    %v118 = vld [vmem:[#allocation8 + $0x138] sm:$0xff]
    %v119 = vld [vmem:[#allocation8 + $0x140] sm:$0xff]
    %v120 = vld [vmem:[#allocation8 + $0x148] sm:$0xff]
    %v121 = vld [vmem:[#allocation8 + $0x150] sm:$0xff]
    %v122 = vld [vmem:[#allocation8 + $0x158] sm:$0xff]
    %v123 = vld [vmem:[#allocation8 + $0x160] sm:$0xff]
    %v124 = vld [vmem:[#allocation8 + $0x168] sm:$0xff]
    %v125 = vld [vmem:[#allocation8 + $0x170] sm:$0xff]
    %v126 = vld [vmem:[#allocation8 + $0x178] sm:$0xff]
    %v127 = vld [vmem:[#allocation8 + $0x180] sm:$0xff]
    %v128 = vld [vmem:[#allocation8 + $0x188] sm:$0xff]
    %v129 = vld [vmem:[#allocation8 + $0x190] sm:$0xff]
    %v130 = vld [vmem:[#allocation8 + $0x198] sm:$0xff]
    %v131 = vld [vmem:[#allocation8 + $0x1a0] sm:$0xff]
    %v132 = vld [vmem:[#allocation8 + $0x1a8] sm:$0xff]
    %v133 = vld [vmem:[#allocation8 + $0x1b0] sm:$0xff]
    %v134 = vld [vmem:[#allocation8 + $0x1b8] sm:$0xff]
    %v135 = vld [vmem:[#allocation8 + $0x1c0] sm:$0xff]
    %v136 = vld [vmem:[#allocation8 + $0x1c8] sm:$0xff]
    %v137 = vld [vmem:[#allocation8 + $0x1d0] sm:$0xff]
    %v138 = vld [vmem:[#allocation8 + $0x1d8] sm:$0xff]
    %v139 = vld [vmem:[#allocation8 + $0x1e0] sm:$0xff]
    %v140 = vld [vmem:[#allocation8 + $0x1e8] sm:$0xff]
    %v141 = vld [vmem:[#allocation8 + $0x1f0] sm:$0xff]
    %v142 = vld [vmem:[#allocation8 + $0x1f8] sm:$0xff]
    %v143 = vld [vmem:[#allocation8 + $0x200] sm:$0xff]
    %v144 = vld [vmem:[#allocation8 + $0x208] sm:$0xff]
    %v145 = vld [vmem:[#allocation8 + $0x210] sm:$0xff]
    %v146 = vld [vmem:[#allocation8 + $0x218] sm:$0xff]
    %v147 = vld [vmem:[#allocation8 + $0x220] sm:$0xff]
    %v148 = vld [vmem:[#allocation8 + $0x228] sm:$0xff]
    %v149 = vld [vmem:[#allocation8 + $0x230] sm:$0xff]
    %v150 = vld [vmem:[#allocation8 + $0x238] sm:$0xff]
    %v151 = vld [vmem:[#allocation8 + $0x240] sm:$0xff]
    %v152 = vld [vmem:[#allocation8 + $0x248] sm:$0xff]
    %v153 = vld [vmem:[#allocation8 + $0x250] sm:$0xff]
    %v154 = vld [vmem:[#allocation8 + $0x258] sm:$0xff]
    %v155 = vld [vmem:[#allocation8 + $0x260] sm:$0xff]
    %v156 = vld [vmem:[#allocation8 + $0x268] sm:$0xff]
    %v157 = vld [vmem:[#allocation8 + $0x270] sm:$0xff]
    %v158 = vld [vmem:[#allocation8 + $0x278] sm:$0xff]
    %v159 = vld [vmem:[#allocation8 + $0x280] sm:$0xff]
    %v160 = vld [vmem:[#allocation8 + $0x288] sm:$0xff]
    %v161 = vld [vmem:[#allocation8 + $0x290] sm:$0xff]
    %v162 = vld [vmem:[#allocation8 + $0x298] sm:$0xff]
    %v163 = vld [vmem:[#allocation8 + $0x2a0] sm:$0xff]
    %v164 = vld [vmem:[#allocation8 + $0x2a8] sm:$0xff]
    %v165 = vld [vmem:[#allocation8 + $0x2b0] sm:$0xff]
    %v166 = vld [vmem:[#allocation8 + $0x2b8] sm:$0xff]
    %v167 = vld [vmem:[#allocation8 + $0x2c0] sm:$0xff]
    %v168 = vld [vmem:[#allocation8 + $0x2c8] sm:$0xff]
    %v169 = vld [vmem:[#allocation8 + $0x2d0] sm:$0xff]
    %v170 = vld [vmem:[#allocation8 + $0x2d8] sm:$0xff]
    %v171 = vld [vmem:[#allocation8 + $0x2e0] sm:$0xff]
    %v172 = vld [vmem:[#allocation8 + $0x2e8] sm:$0xff]
    %v173 = vld [vmem:[#allocation8 + $0x2f0] sm:$0xff]
    %v174 = vld [vmem:[#allocation8 + $0x2f8] sm:$0xff]
    %v175 = vld [vmem:[#allocation8 + $0x300] sm:$0xff]
    %v176 = vld [vmem:[#allocation8 + $0x308] sm:$0xff]
    %v177 = vld [vmem:[#allocation8 + $0x310] sm:$0xff]
    %v178 = vld [vmem:[#allocation8 + $0x318] sm:$0xff]
    %v179 = vld [vmem:[#allocation8 + $0x320] sm:$0xff]
    %v180 = vld [vmem:[#allocation8 + $0x328] sm:$0xff]
    %v181 = vld [vmem:[#allocation8 + $0x330] sm:$0xff]
    %v182 = vld [vmem:[#allocation8 + $0x338] sm:$0xff]
    %v183 = vld [vmem:[#allocation8 + $0x340] sm:$0xff]
    %v184 = vld [vmem:[#allocation8 + $0x348] sm:$0xff]
    %v185 = vld [vmem:[#allocation8 + $0x350] sm:$0xff]
    %v186 = vld [vmem:[#allocation8 + $0x358] sm:$0xff]
    %v187 = vld [vmem:[#allocation8 + $0x360] sm:$0xff]
    %v188 = vld [vmem:[#allocation8 + $0x368] sm:$0xff]
    %v189 = vld [vmem:[#allocation8 + $0x370] sm:$0xff]
    %v190 = vld [vmem:[#allocation8 + $0x378] sm:$0xff]
    %v191 = vld [vmem:[#allocation8 + $0x380] sm:$0xff]
    %v192 = vld [vmem:[#allocation8 + $0x388] sm:$0xff]
    %v193 = vld [vmem:[#allocation8 + $0x390] sm:$0xff]
    %v194 = vld [vmem:[#allocation8 + $0x398] sm:$0xff]
    %v195 = vld [vmem:[#allocation8 + $0x3a0] sm:$0xff]
    %v196 = vld [vmem:[#allocation8 + $0x3a8] sm:$0xff]
    %v197 = vld [vmem:[#allocation8 + $0x3b0] sm:$0xff]
    %v198 = vld [vmem:[#allocation8 + $0x3b8] sm:$0xff]
    %v199 = vld [vmem:[#allocation8 + $0x3c0] sm:$0xff]
    %v200 = vld [vmem:[#allocation8 + $0x3c8] sm:$0xff]
    %v201 = vld [vmem:[#allocation8 + $0x3d0] sm:$0xff]
    %v202 = vld [vmem:[#allocation8 + $0x3d8] sm:$0xff]
    %v203 = vld [vmem:[#allocation8 + $0x3e0] sm:$0xff]
    %v204 = vld [vmem:[#allocation8 + $0x3e8] sm:$0xff]
    %v205 = vld [vmem:[#allocation8 + $0x3f0] sm:$0xff]
    %v206 = vld [vmem:[#allocation8 + $0x3f8] sm:$0xff]
    %v207 = vunpack.c.l.bf16 %v79
    %v208 = vunpack.c.h.bf16 %v79
    %v209 = vunpack.c.l.bf16 %v80
    %v210 = vunpack.c.h.bf16 %v80
    %v211 = vunpack.c.l.bf16 %v81
    %v212 = vunpack.c.h.bf16 %v81
    %v213 = vunpack.c.l.bf16 %v82
    %v214 = vunpack.c.h.bf16 %v82
    %v215 = vunpack.c.l.bf16 %v83
    %v216 = vunpack.c.h.bf16 %v83
    %v217 = vunpack.c.l.bf16 %v84
    %v218 = vunpack.c.h.bf16 %v84
    %v219 = vunpack.c.l.bf16 %v85
    %v220 = vunpack.c.h.bf16 %v85
    %v221 = vunpack.c.l.bf16 %v86
    %v222 = vunpack.c.h.bf16 %v86
    %v223 = vunpack.c.l.bf16 %v87
    %v224 = vunpack.c.h.bf16 %v87
    %v225 = vunpack.c.l.bf16 %v88
    %v226 = vunpack.c.h.bf16 %v88
    %v227 = vunpack.c.l.bf16 %v89
    %v228 = vunpack.c.h.bf16 %v89
    %v229 = vunpack.c.l.bf16 %v90
    %v230 = vunpack.c.h.bf16 %v90
    %v231 = vunpack.c.l.bf16 %v91
    %v232 = vunpack.c.h.bf16 %v91
    %v233 = vunpack.c.l.bf16 %v92
    %v234 = vunpack.c.h.bf16 %v92
    %v235 = vunpack.c.l.bf16 %v93
    %v236 = vunpack.c.h.bf16 %v93
    %v237 = vunpack.c.l.bf16 %v94
    %v238 = vunpack.c.h.bf16 %v94
    %v239 = vunpack.c.l.bf16 %v95
    %v240 = vunpack.c.h.bf16 %v95
    %v241 = vunpack.c.l.bf16 %v96
    %v242 = vunpack.c.h.bf16 %v96
    %v243 = vunpack.c.l.bf16 %v97
    %v244 = vunpack.c.h.bf16 %v97
    %v245 = vunpack.c.l.bf16 %v98
    %v246 = vunpack.c.h.bf16 %v98
    %v247 = vunpack.c.l.bf16 %v99
    %v248 = vunpack.c.h.bf16 %v99
    %v249 = vunpack.c.l.bf16 %v100
    %v250 = vunpack.c.h.bf16 %v100
    %v251 = vunpack.c.l.bf16 %v101
    %v252 = vunpack.c.h.bf16 %v101
    %v253 = vunpack.c.l.bf16 %v102
    %v254 = vunpack.c.h.bf16 %v102
    %v255 = vunpack.c.l.bf16 %v103
    %v256 = vunpack.c.h.bf16 %v103
    %v257 = vunpack.c.l.bf16 %v104
    %v258 = vunpack.c.h.bf16 %v104
    %v259 = vunpack.c.l.bf16 %v105
    %v260 = vunpack.c.h.bf16 %v105
    %v261 = vunpack.c.l.bf16 %v106
    %v262 = vunpack.c.h.bf16 %v106
    %v263 = vunpack.c.l.bf16 %v107
    %v264 = vunpack.c.h.bf16 %v107
    %v265 = vunpack.c.l.bf16 %v108
    %v266 = vunpack.c.h.bf16 %v108
    %v267 = vunpack.c.l.bf16 %v109
    %v268 = vunpack.c.h.bf16 %v109
    %v269 = vunpack.c.l.bf16 %v110
    %v270 = vunpack.c.h.bf16 %v110
    %v271 = vunpack.c.l.bf16 %v111
    %v272 = vunpack.c.h.bf16 %v111
    %v273 = vunpack.c.l.bf16 %v112
    %v274 = vunpack.c.h.bf16 %v112
    %v275 = vunpack.c.l.bf16 %v113
    %v276 = vunpack.c.h.bf16 %v113
    %v277 = vunpack.c.l.bf16 %v114
    %v278 = vunpack.c.h.bf16 %v114
    %v279 = vunpack.c.l.bf16 %v115
    %v280 = vunpack.c.h.bf16 %v115
    %v281 = vunpack.c.l.bf16 %v116
    %v282 = vunpack.c.h.bf16 %v116
    %v283 = vunpack.c.l.bf16 %v117
    %v284 = vunpack.c.h.bf16 %v117
    %v285 = vunpack.c.l.bf16 %v118
    %v286 = vunpack.c.h.bf16 %v118
    %v287 = vunpack.c.l.bf16 %v119
    %v288 = vunpack.c.h.bf16 %v119
    %v289 = vunpack.c.l.bf16 %v120
    %v290 = vunpack.c.h.bf16 %v120
    %v291 = vunpack.c.l.bf16 %v121
    %v292 = vunpack.c.h.bf16 %v121
    %v293 = vunpack.c.l.bf16 %v122
    %v294 = vunpack.c.h.bf16 %v122
    %v295 = vunpack.c.l.bf16 %v123
    %v296 = vunpack.c.h.bf16 %v123
    %v297 = vunpack.c.l.bf16 %v124
    %v298 = vunpack.c.h.bf16 %v124
    %v299 = vunpack.c.l.bf16 %v125
    %v300 = vunpack.c.h.bf16 %v125
    %v301 = vunpack.c.l.bf16 %v126
    %v302 = vunpack.c.h.bf16 %v126
    %v303 = vunpack.c.l.bf16 %v127
    %v304 = vunpack.c.h.bf16 %v127
    %v305 = vunpack.c.l.bf16 %v128
    %v306 = vunpack.c.h.bf16 %v128
    %v307 = vunpack.c.l.bf16 %v129
    %v308 = vunpack.c.h.bf16 %v129
    %v309 = vunpack.c.l.bf16 %v130
    %v310 = vunpack.c.h.bf16 %v130
    %v311 = vunpack.c.l.bf16 %v131
    %v312 = vunpack.c.h.bf16 %v131
    %v313 = vunpack.c.l.bf16 %v132
    %v314 = vunpack.c.h.bf16 %v132
    %v315 = vunpack.c.l.bf16 %v133
    %v316 = vunpack.c.h.bf16 %v133
    %v317 = vunpack.c.l.bf16 %v134
    %v318 = vunpack.c.h.bf16 %v134
    %v319 = vunpack.c.l.bf16 %v135
    %v320 = vunpack.c.h.bf16 %v135
    %v321 = vunpack.c.l.bf16 %v136
    %v322 = vunpack.c.h.bf16 %v136
    %v323 = vunpack.c.l.bf16 %v137
    %v324 = vunpack.c.h.bf16 %v137
    %v325 = vunpack.c.l.bf16 %v138
    %v326 = vunpack.c.h.bf16 %v138
    %v327 = vunpack.c.l.bf16 %v139
    %v328 = vunpack.c.h.bf16 %v139
    %v329 = vunpack.c.l.bf16 %v140
    %v330 = vunpack.c.h.bf16 %v140
    %v331 = vunpack.c.l.bf16 %v141
    %v332 = vunpack.c.h.bf16 %v141
    %v333 = vunpack.c.l.bf16 %v142
    %v334 = vunpack.c.h.bf16 %v142
    %v335 = vunpack.c.l.bf16 %v143
    %v336 = vunpack.c.h.bf16 %v143
    %v337 = vunpack.c.l.bf16 %v144
    %v338 = vunpack.c.h.bf16 %v144
    %v339 = vunpack.c.l.bf16 %v145
    %v340 = vunpack.c.h.bf16 %v145
    %v341 = vunpack.c.l.bf16 %v146
    %v342 = vunpack.c.h.bf16 %v146
    %v343 = vunpack.c.l.bf16 %v147
    %v344 = vunpack.c.h.bf16 %v147
    %v345 = vunpack.c.l.bf16 %v148
    %v346 = vunpack.c.h.bf16 %v148
    %v347 = vunpack.c.l.bf16 %v149
    %v348 = vunpack.c.h.bf16 %v149
    %v349 = vunpack.c.l.bf16 %v150
    %v350 = vunpack.c.h.bf16 %v150
    %v351 = vunpack.c.l.bf16 %v151
    %v352 = vunpack.c.h.bf16 %v151
    %v353 = vunpack.c.l.bf16 %v152
    %v354 = vunpack.c.h.bf16 %v152
    %v355 = vunpack.c.l.bf16 %v153
    %v356 = vunpack.c.h.bf16 %v153
    %v357 = vunpack.c.l.bf16 %v154
    %v358 = vunpack.c.h.bf16 %v154
    %v359 = vunpack.c.l.bf16 %v155
    %v360 = vunpack.c.h.bf16 %v155
    %v361 = vunpack.c.l.bf16 %v156
    %v362 = vunpack.c.h.bf16 %v156
    %v363 = vunpack.c.l.bf16 %v157
    %v364 = vunpack.c.h.bf16 %v157
    %v365 = vunpack.c.l.bf16 %v158
    %v366 = vunpack.c.h.bf16 %v158
    %v367 = vunpack.c.l.bf16 %v159
    %v368 = vunpack.c.h.bf16 %v159
    %v369 = vunpack.c.l.bf16 %v160
    %v370 = vunpack.c.h.bf16 %v160
    %v371 = vunpack.c.l.bf16 %v161
    %v372 = vunpack.c.h.bf16 %v161
    %v373 = vunpack.c.l.bf16 %v162
    %v374 = vunpack.c.h.bf16 %v162
    %v375 = vunpack.c.l.bf16 %v163
    %v376 = vunpack.c.h.bf16 %v163
    %v377 = vunpack.c.l.bf16 %v164
    %v378 = vunpack.c.h.bf16 %v164
    %v379 = vunpack.c.l.bf16 %v165
    %v380 = vunpack.c.h.bf16 %v165
    %v381 = vunpack.c.l.bf16 %v166
    %v382 = vunpack.c.h.bf16 %v166
    %v383 = vunpack.c.l.bf16 %v167
    %v384 = vunpack.c.h.bf16 %v167
    %v385 = vunpack.c.l.bf16 %v168
    %v386 = vunpack.c.h.bf16 %v168
    %v387 = vunpack.c.l.bf16 %v169
    %v388 = vunpack.c.h.bf16 %v169
    %v389 = vunpack.c.l.bf16 %v170
    %v390 = vunpack.c.h.bf16 %v170
    %v391 = vunpack.c.l.bf16 %v171
    %v392 = vunpack.c.h.bf16 %v171
    %v393 = vunpack.c.l.bf16 %v172
    %v394 = vunpack.c.h.bf16 %v172
    %v395 = vunpack.c.l.bf16 %v173
    %v396 = vunpack.c.h.bf16 %v173
    %v397 = vunpack.c.l.bf16 %v174
    %v398 = vunpack.c.h.bf16 %v174
    %v399 = vunpack.c.l.bf16 %v175
    %v400 = vunpack.c.h.bf16 %v175
    %v401 = vunpack.c.l.bf16 %v176
    %v402 = vunpack.c.h.bf16 %v176
    %v403 = vunpack.c.l.bf16 %v177
    %v404 = vunpack.c.h.bf16 %v177
    %v405 = vunpack.c.l.bf16 %v178
    %v406 = vunpack.c.h.bf16 %v178
    %v407 = vunpack.c.l.bf16 %v179
    %v408 = vunpack.c.h.bf16 %v179
    %v409 = vunpack.c.l.bf16 %v180
    %v410 = vunpack.c.h.bf16 %v180
    %v411 = vunpack.c.l.bf16 %v181
    %v412 = vunpack.c.h.bf16 %v181
    %v413 = vunpack.c.l.bf16 %v182
    %v414 = vunpack.c.h.bf16 %v182
    %v415 = vunpack.c.l.bf16 %v183
    %v416 = vunpack.c.h.bf16 %v183
    %v417 = vunpack.c.l.bf16 %v184
    %v418 = vunpack.c.h.bf16 %v184
    %v419 = vunpack.c.l.bf16 %v185
    %v420 = vunpack.c.h.bf16 %v185
    %v421 = vunpack.c.l.bf16 %v186
    %v422 = vunpack.c.h.bf16 %v186
    %v423 = vunpack.c.l.bf16 %v187
    %v424 = vunpack.c.h.bf16 %v187
    %v425 = vunpack.c.l.bf16 %v188
    %v426 = vunpack.c.h.bf16 %v188
    %v427 = vunpack.c.l.bf16 %v189
    %v428 = vunpack.c.h.bf16 %v189
    %v429 = vunpack.c.l.bf16 %v190
    %v430 = vunpack.c.h.bf16 %v190
    %v431 = vunpack.c.l.bf16 %v191
    %v432 = vunpack.c.h.bf16 %v191
    %v433 = vunpack.c.l.bf16 %v192
    %v434 = vunpack.c.h.bf16 %v192
    %v435 = vunpack.c.l.bf16 %v193
    %v436 = vunpack.c.h.bf16 %v193
    %v437 = vunpack.c.l.bf16 %v194
    %v438 = vunpack.c.h.bf16 %v194
    %v439 = vunpack.c.l.bf16 %v195
    %v440 = vunpack.c.h.bf16 %v195
    %v441 = vunpack.c.l.bf16 %v196
    %v442 = vunpack.c.h.bf16 %v196
    %v443 = vunpack.c.l.bf16 %v197
    %v444 = vunpack.c.h.bf16 %v197
    %v445 = vunpack.c.l.bf16 %v198
    %v446 = vunpack.c.h.bf16 %v198
    %v447 = vunpack.c.l.bf16 %v199
    %v448 = vunpack.c.h.bf16 %v199
    %v449 = vunpack.c.l.bf16 %v200
    %v450 = vunpack.c.h.bf16 %v200
    %v451 = vunpack.c.l.bf16 %v201
    %v452 = vunpack.c.h.bf16 %v201
    %v453 = vunpack.c.l.bf16 %v202
    %v454 = vunpack.c.h.bf16 %v202
    %v455 = vunpack.c.l.bf16 %v203
    %v456 = vunpack.c.h.bf16 %v203
    %v457 = vunpack.c.l.bf16 %v204
    %v458 = vunpack.c.h.bf16 %v204
    %v459 = vunpack.c.l.bf16 %v205
    %v460 = vunpack.c.h.bf16 %v205
    %v461 = vunpack.c.l.bf16 %v206
    %v462 = vunpack.c.h.bf16 %v206
    %v463 = vld [vmem:[#allocation5] sm:$0x3]
    %v464 = vld [vmem:[#allocation7] sm:$0x3]
    %v465 = vld [vmem:[%s5] sm:$0xff]
    %v467 = vlaneseq
    %v468 = vshrl.u32 %v467, 7
    %v469 = vsub.s32 0, %v468
    %v470 = vrot.slane %v78, %v469
    %472 = vmatprep.subr.mxu0 %v328
    %473 = vmatpush1.msra.mxu0 %v327
    %474 = vmatprep.subr.mxu0 %v320
    %475 = vmatpush1.msra.mxu0 %v319
    %476 = vmatprep.subr.mxu0 %v312
    %477 = vmatpush1.msra.mxu0 %v311
    %478 = vmatprep.subr.mxu0 %v304
    %479 = vmatpush1.msra.mxu0 %v303
    %480 = vmatprep.subr.mxu0 %v296
    %481 = vmatpush1.msra.mxu0 %v295
    %482 = vmatprep.subr.mxu0 %v288
    %483 = vmatpush1.msra.mxu0 %v287
    %484 = vmatprep.subr.mxu0 %v280
    %485 = vmatpush1.msra.mxu0 %v279
    %486 = vmatprep.subr.mxu0 %v272
    %487 = vmatpush1.msra.mxu0 %v271
    %488 = vmatprep.subr.mxu0 %v264
    %489 = vmatpush1.msra.mxu0 %v263
    %490 = vmatprep.subr.mxu0 %v256
    %491 = vmatpush1.msra.mxu0 %v255
    %492 = vmatprep.subr.mxu0 %v248
    %493 = vmatpush1.msra.mxu0 %v247
    %494 = vmatprep.subr.mxu0 %v240
    %495 = vmatpush1.msra.mxu0 %v239
    %496 = vmatprep.subr.mxu0 %v232
    %497 = vmatpush1.msra.mxu0 %v231
    %498 = vmatprep.subr.mxu0 %v224
    %499 = vmatpush1.msra.mxu0 %v223
    %500 = vmatprep.subr.mxu0 %v216
    %501 = vmatpush1.msra.mxu0 %v215
    %502 = vmatprep.subr.mxu0 %v208
    %503 = vmatpush1.msra.mxu0 %v207
    %504 = vmatprep.subr.mxu0 %v456
    %505 = vmatpush2.msra.mxu0 %v455
    %506 = vmatprep.subr.mxu0 %v448
    %507 = vmatpush2.msra.mxu0 %v447
    %508 = vmatprep.subr.mxu0 %v440
    %509 = vmatpush2.msra.mxu0 %v439
    %510 = vmatprep.subr.mxu0 %v432
    %511 = vmatpush2.msra.mxu0 %v431
    %512 = vmatprep.subr.mxu0 %v424
    %513 = vmatpush2.msra.mxu0 %v423
    %514 = vmatprep.subr.mxu0 %v416
    %515 = vmatpush2.msra.mxu0 %v415
    %516 = vmatprep.subr.mxu0 %v408
    %517 = vmatpush2.msra.mxu0 %v407
    %518 = vmatprep.subr.mxu0 %v400
    %519 = vmatpush2.msra.mxu0 %v399
    %520 = vmatprep.subr.mxu0 %v392
    %521 = vmatpush2.msra.mxu0 %v391
    %522 = vmatprep.subr.mxu0 %v384
    %523 = vmatpush2.msra.mxu0 %v383
    %524 = vmatprep.subr.mxu0 %v376
    %525 = vmatpush2.msra.mxu0 %v375
    %526 = vmatprep.subr.mxu0 %v368
    %527 = vmatpush2.msra.mxu0 %v367
    %528 = vmatprep.subr.mxu0 %v360
    %529 = vmatpush2.msra.mxu0 %v359
    %530 = vmatprep.subr.mxu0 %v352
    %531 = vmatpush2.msra.mxu0 %v351
    %532 = vmatprep.subr.mxu0 %v344
    %533 = vmatpush2.msra.mxu0 %v343
    %534 = vmatprep.subr.mxu0 %v336
    %535 = vmatpush2.msra.mxu0 %v335
    %536 = vmatprep.mubr.f32.mxu0 %v463
    %537 = vmatmul.mubr.f32.gmra.mxu0 %v470
    %v538 = vpop.f32.mrf.mxu0
    %v539 = vadd.f32 0.0, %v538
    %v540 = vpop.f32.mrf.mxu0
    %v541 = vadd.f32 0.0, %v540
    %542 = vdwg.mxu0
    %543 = vmatprep.subr.mxu0 %v330
    %544 = vmatpush1.msra.mxu0 %v329
    %545 = vmatprep.subr.mxu0 %v322
    %546 = vmatpush1.msra.mxu0 %v321
    %547 = vmatprep.subr.mxu0 %v314
    %548 = vmatpush1.msra.mxu0 %v313
    %549 = vmatprep.subr.mxu0 %v306
    %550 = vmatpush1.msra.mxu0 %v305
    %551 = vmatprep.subr.mxu0 %v298
    %552 = vmatpush1.msra.mxu0 %v297
    %553 = vmatprep.subr.mxu0 %v290
    %554 = vmatpush1.msra.mxu0 %v289
    %555 = vmatprep.subr.mxu0 %v282
    %556 = vmatpush1.msra.mxu0 %v281
    %557 = vmatprep.subr.mxu0 %v274
    %558 = vmatpush1.msra.mxu0 %v273
    %559 = vmatprep.subr.mxu0 %v266
    %560 = vmatpush1.msra.mxu0 %v265
    %561 = vmatprep.subr.mxu0 %v258
    %562 = vmatpush1.msra.mxu0 %v257
    %563 = vmatprep.subr.mxu0 %v250
    %564 = vmatpush1.msra.mxu0 %v249
    %565 = vmatprep.subr.mxu0 %v242
    %566 = vmatpush1.msra.mxu0 %v241
    %567 = vmatprep.subr.mxu0 %v234
    %568 = vmatpush1.msra.mxu0 %v233
    %569 = vmatprep.subr.mxu0 %v226
    %570 = vmatpush1.msra.mxu0 %v225
    %571 = vmatprep.subr.mxu0 %v218
    %572 = vmatpush1.msra.mxu0 %v217
    %573 = vmatprep.subr.mxu0 %v210
    %574 = vmatpush1.msra.mxu0 %v209
    %575 = vmatprep.subr.mxu0 %v458
    %576 = vmatpush2.msra.mxu0 %v457
    %577 = vmatprep.subr.mxu0 %v450
    %578 = vmatpush2.msra.mxu0 %v449
    %579 = vmatprep.subr.mxu0 %v442
    %580 = vmatpush2.msra.mxu0 %v441
    %581 = vmatprep.subr.mxu0 %v434
    %582 = vmatpush2.msra.mxu0 %v433
    %583 = vmatprep.subr.mxu0 %v426
    %584 = vmatpush2.msra.mxu0 %v425
    %585 = vmatprep.subr.mxu0 %v418
    %586 = vmatpush2.msra.mxu0 %v417
    %587 = vmatprep.subr.mxu0 %v410
    %588 = vmatpush2.msra.mxu0 %v409
    %589 = vmatprep.subr.mxu0 %v402
    %590 = vmatpush2.msra.mxu0 %v401
    %591 = vmatprep.subr.mxu0 %v394
    %592 = vmatpush2.msra.mxu0 %v393
    %593 = vmatprep.subr.mxu0 %v386
    %594 = vmatpush2.msra.mxu0 %v385
    %595 = vmatprep.subr.mxu0 %v378
    %596 = vmatpush2.msra.mxu0 %v377
    %597 = vmatprep.subr.mxu0 %v370
    %598 = vmatpush2.msra.mxu0 %v369
    %599 = vmatprep.subr.mxu0 %v362
    %600 = vmatpush2.msra.mxu0 %v361
    %601 = vmatprep.subr.mxu0 %v354
    %602 = vmatpush2.msra.mxu0 %v353
    %603 = vmatprep.subr.mxu0 %v346
    %604 = vmatpush2.msra.mxu0 %v345
    %605 = vmatprep.subr.mxu0 %v338
    %606 = vmatpush2.msra.mxu0 %v337
    %607 = vmatprep.mubr.f32.mxu0 %v463
    %608 = vmatmul.mubr.f32.gmra.mxu0 %v470
    %v609 = vpop.f32.mrf.mxu0
    %v610 = vadd.f32 0.0, %v609
    %v611 = vpop.f32.mrf.mxu0
    %v612 = vadd.f32 0.0, %v611
    %613 = vdwg.mxu0
    %614 = vmatprep.subr.mxu0 %v332
    %615 = vmatpush1.msra.mxu0 %v331
    %616 = vmatprep.subr.mxu0 %v324
    %617 = vmatpush1.msra.mxu0 %v323
    %618 = vmatprep.subr.mxu0 %v316
    %619 = vmatpush1.msra.mxu0 %v315
    %620 = vmatprep.subr.mxu0 %v308
    %621 = vmatpush1.msra.mxu0 %v307
    %622 = vmatprep.subr.mxu0 %v300
    %623 = vmatpush1.msra.mxu0 %v299
    %624 = vmatprep.subr.mxu0 %v292
    %625 = vmatpush1.msra.mxu0 %v291
    %626 = vmatprep.subr.mxu0 %v284
    %627 = vmatpush1.msra.mxu0 %v283
    %628 = vmatprep.subr.mxu0 %v276
    %629 = vmatpush1.msra.mxu0 %v275
    %630 = vmatprep.subr.mxu0 %v268
    %631 = vmatpush1.msra.mxu0 %v267
    %632 = vmatprep.subr.mxu0 %v260
    %633 = vmatpush1.msra.mxu0 %v259
    %634 = vmatprep.subr.mxu0 %v252
    %635 = vmatpush1.msra.mxu0 %v251
    %636 = vmatprep.subr.mxu0 %v244
    %637 = vmatpush1.msra.mxu0 %v243
    %638 = vmatprep.subr.mxu0 %v236
    %639 = vmatpush1.msra.mxu0 %v235
    %640 = vmatprep.subr.mxu0 %v228
    %641 = vmatpush1.msra.mxu0 %v227
    %642 = vmatprep.subr.mxu0 %v220
    %643 = vmatpush1.msra.mxu0 %v219
    %644 = vmatprep.subr.mxu0 %v212
    %645 = vmatpush1.msra.mxu0 %v211
    %646 = vmatprep.subr.mxu0 %v460
    %647 = vmatpush2.msra.mxu0 %v459
    %648 = vmatprep.subr.mxu0 %v452
    %649 = vmatpush2.msra.mxu0 %v451
    %650 = vmatprep.subr.mxu0 %v444
    %651 = vmatpush2.msra.mxu0 %v443
    %652 = vmatprep.subr.mxu0 %v436
    %653 = vmatpush2.msra.mxu0 %v435
    %654 = vmatprep.subr.mxu0 %v428
    %655 = vmatpush2.msra.mxu0 %v427
    %656 = vmatprep.subr.mxu0 %v420
    %657 = vmatpush2.msra.mxu0 %v419
    %658 = vmatprep.subr.mxu0 %v412
    %659 = vmatpush2.msra.mxu0 %v411
    %660 = vmatprep.subr.mxu0 %v404
    %661 = vmatpush2.msra.mxu0 %v403
    %662 = vmatprep.subr.mxu0 %v396
    %663 = vmatpush2.msra.mxu0 %v395
    %664 = vmatprep.subr.mxu0 %v388
    %665 = vmatpush2.msra.mxu0 %v387
    %666 = vmatprep.subr.mxu0 %v380
    %667 = vmatpush2.msra.mxu0 %v379
    %668 = vmatprep.subr.mxu0 %v372
    %669 = vmatpush2.msra.mxu0 %v371
    %670 = vmatprep.subr.mxu0 %v364
    %671 = vmatpush2.msra.mxu0 %v363
    %672 = vmatprep.subr.mxu0 %v356
    %673 = vmatpush2.msra.mxu0 %v355
    %674 = vmatprep.subr.mxu0 %v348
    %675 = vmatpush2.msra.mxu0 %v347
    %676 = vmatprep.subr.mxu0 %v340
    %677 = vmatpush2.msra.mxu0 %v339
    %678 = vmatprep.mubr.f32.mxu0 %v463
    %679 = vmatmul.mubr.f32.gmra.mxu0 %v470
    %v680 = vpop.f32.mrf.mxu0
    %v681 = vadd.f32 0.0, %v680
    %v682 = vpop.f32.mrf.mxu0
    %v683 = vadd.f32 0.0, %v682
    %684 = vdwg.mxu0
    %685 = vmatprep.subr.mxu0 %v334
    %686 = vmatpush1.msra.mxu0 %v333
    %687 = vmatprep.subr.mxu0 %v326
    %688 = vmatpush1.msra.mxu0 %v325
    %689 = vmatprep.subr.mxu0 %v318
    %690 = vmatpush1.msra.mxu0 %v317
    %691 = vmatprep.subr.mxu0 %v310
    %692 = vmatpush1.msra.mxu0 %v309
    %693 = vmatprep.subr.mxu0 %v302
    %694 = vmatpush1.msra.mxu0 %v301
    %695 = vmatprep.subr.mxu0 %v294
    %696 = vmatpush1.msra.mxu0 %v293
    %697 = vmatprep.subr.mxu0 %v286
    %698 = vmatpush1.msra.mxu0 %v285
    %699 = vmatprep.subr.mxu0 %v278
    %700 = vmatpush1.msra.mxu0 %v277
    %701 = vmatprep.subr.mxu0 %v270
    %702 = vmatpush1.msra.mxu0 %v269
    %703 = vmatprep.subr.mxu0 %v262
    %704 = vmatpush1.msra.mxu0 %v261
    %705 = vmatprep.subr.mxu0 %v254
    %706 = vmatpush1.msra.mxu0 %v253
    %707 = vmatprep.subr.mxu0 %v246
    %708 = vmatpush1.msra.mxu0 %v245
    %709 = vmatprep.subr.mxu0 %v238
    %710 = vmatpush1.msra.mxu0 %v237
    %711 = vmatprep.subr.mxu0 %v230
    %712 = vmatpush1.msra.mxu0 %v229
    %713 = vmatprep.subr.mxu0 %v222
    %714 = vmatpush1.msra.mxu0 %v221
    %715 = vmatprep.subr.mxu0 %v214
    %716 = vmatpush1.msra.mxu0 %v213
    %717 = vmatprep.subr.mxu0 %v462
    %718 = vmatpush2.msra.mxu0 %v461
    %719 = vmatprep.subr.mxu0 %v454
    %720 = vmatpush2.msra.mxu0 %v453
    %721 = vmatprep.subr.mxu0 %v446
    %722 = vmatpush2.msra.mxu0 %v445
    %723 = vmatprep.subr.mxu0 %v438
    %724 = vmatpush2.msra.mxu0 %v437
    %725 = vmatprep.subr.mxu0 %v430
    %726 = vmatpush2.msra.mxu0 %v429
    %727 = vmatprep.subr.mxu0 %v422
    %728 = vmatpush2.msra.mxu0 %v421
    %729 = vmatprep.subr.mxu0 %v414
    %730 = vmatpush2.msra.mxu0 %v413
    %731 = vmatprep.subr.mxu0 %v406
    %732 = vmatpush2.msra.mxu0 %v405
    %733 = vmatprep.subr.mxu0 %v398
    %734 = vmatpush2.msra.mxu0 %v397
    %735 = vmatprep.subr.mxu0 %v390
    %736 = vmatpush2.msra.mxu0 %v389
    %737 = vmatprep.subr.mxu0 %v382
    %738 = vmatpush2.msra.mxu0 %v381
    %739 = vmatprep.subr.mxu0 %v374
    %740 = vmatpush2.msra.mxu0 %v373
    %741 = vmatprep.subr.mxu0 %v366
    %742 = vmatpush2.msra.mxu0 %v365
    %743 = vmatprep.subr.mxu0 %v358
    %744 = vmatpush2.msra.mxu0 %v357
    %745 = vmatprep.subr.mxu0 %v350
    %746 = vmatpush2.msra.mxu0 %v349
    %747 = vmatprep.subr.mxu0 %v342
    %748 = vmatpush2.msra.mxu0 %v341
    %749 = vmatprep.mubr.f32.mxu0 %v463
    %750 = vmatmul.mubr.f32.gmra.mxu0 %v470
    %v751 = vpop.f32.mrf.mxu0
    %v752 = vadd.f32 0.0, %v751
    %v753 = vpop.f32.mrf.mxu0
    %v754 = vadd.f32 0.0, %v753
    %755 = vdwg.mxu0
    %vm756 = vcmask 1040384
    %v757 = vsel %vm756, %v539, %v681
    %v758 = vsel %vm756, %v541, %v683
    %v759 = vsel %vm756, %v610, %v752
    %v760 = vsel %vm756, %v612, %v754
    %v762 = vcombine.high %v465, %v465
    %v764 = vunpack.c.l.s4 1983009808
    %v765 = vunpack.c.0.s8 %v764
    %v766 = vlaneseq
    %v767 = vshrl.u32 %v766, 7
    %v768 = vsub.s32 %v765, %v767
    %v769 = vrot.slane %v465, %v768
    %v771 = vunpack.c.l.s4 1983009808
    %v772 = vunpack.c.0.s8 %v771
    %v773 = vlaneseq
    %v774 = vshrl.u32 %v773, 7
    %v775 = vsub.s32 %v772, %v774
    %v776 = vrot.slane %v762, %v775
    %v777 = vcombine.high %v769, %v769
    %v778 = vcombine.high %v776, %v776
    %v783 = vadd.f32 %v757, %v769
    %v784 = vadd.f32 %v758, %v777
    %v785 = vadd.f32 %v759, %v776
    %v786 = vadd.f32 %v760, %v778
    %v787 = vxor.u32 %v783, 2147483648
    %v788 = vmul.f32 %v787, 1.442695
    %v789 = vpow.pop %v788
    %v790 = vadd.f32 %v789, 1.0
    %v791 = vrcp.pop %v790
    %v792 = vmul.f32 1.0, %v791
    %v793 = vxor.u32 %v784, 2147483648
    %v794 = vmul.f32 %v793, 1.442695
    %v795 = vpow.pop %v794
    %v796 = vadd.f32 %v795, 1.0
    %v797 = vrcp.pop %v796
    %v798 = vmul.f32 1.0, %v797
    %v799 = vtanh.pop %v785
    %v800 = vxor.u32 %v786, 2147483648
    %v801 = vmul.f32 %v800, 1.442695
    %v802 = vpow.pop %v801
    %v803 = vadd.f32 %v802, 1.0
    %v804 = vrcp.pop %v803
    %v805 = vmul.f32 1.0, %v804
    %v806 = vmul.f32 %v798, %v464
    %v807 = vmul.f32 %v792, %v799
    %v808 = vadd.f32 %v806, %v807
    %v809 = vtanh.pop %v808
    %v810 = vmul.f32 %v805, %v809
    %811 = vst [vmem:[#allocation10] sm:$0x3] %v810
    %812 = vst [vmem:[#allocation11] sm:$0x3] %v808
    // Predicated region
    $region42: #{tpu_custom_call.1} parent=1 // pred_check
      _
    $region43: #{tpu_custom_call.1} parent=1 // pred_check_branch
      %814 = sbr.rel (0) target = $region45
    $region44: #{tpu_custom_call.1} parent=1 // pred_region
      %s816 = ssub.s32 32, 32
      %817 = vsyncadd [#allocation4], %s816
      %s819 = sshll.u32 [#allocation10], 4
      %s820 = int_to_ptr.vmem [resolvable:$true] %s819
      %822 = dma.vmem_to_hbm [thread:$0]  %s820, 32, %s6, [#allocation4]
    $region45: #{tpu_custom_call.1} parent=1 // pred_fallthru
      _
    // Predicated region
    $region46: #{tpu_custom_call.1} parent=1 // pred_check
      _
    $region47: #{tpu_custom_call.1} parent=1 // pred_check_branch
      %824 = sbr.rel (0) target = $region49
    $region48: #{tpu_custom_call.1} parent=1 // pred_region
      %s826 = ssub.s32 32, 32
      %827 = vsyncadd [#allocation12], %s826
      %s829 = sshll.u32 [#allocation11], 4
      %s830 = int_to_ptr.vmem [resolvable:$true] %s829
      %832 = dma.vmem_to_hbm [thread:$0]  %s830, 32, %s7, [#allocation12]
    $region49: #{tpu_custom_call.1} parent=1 // pred_fallthru
      _
    // Predicated region
    $region50: #{tpu_custom_call.1} parent=1 // pred_check
      _
    $region51: #{tpu_custom_call.1} parent=1 // pred_check_branch
      %834 = sbr.rel (0) target = $region53
    $region52: #{tpu_custom_call.1} parent=1 // pred_region
      %835 = dma.done [#allocation4], 32
    $region53: #{tpu_custom_call.1} parent=1 // pred_fallthru
      _
    // Predicated region
    $region54: #{tpu_custom_call.1} parent=1 // pred_check
      _
    $region55: #{tpu_custom_call.1} parent=1 // pred_check_branch
      %837 = sbr.rel (0) target = $region57
    $region56: #{tpu_custom_call.1} parent=1 // pred_region
      %838 = dma.done [#allocation12], 32
    $region57: #{tpu_custom_call.1} parent=1 // pred_fallthru
      _
    %839 = vsyncpa [#allocation3], 1
    %840 = vsyncpa [#allocation6], 1
    %841 = vsyncpa [#allocation9], 1
    %842 = vsyncpa [#allocation4], 1
    %843 = vsyncpa [#allocation12], 1

</llo_original>
